<compile_context>
chip_gen: v7x
topology: tpu7x:2x2x1
jax: 0.10.0
libtpu: 0.0.40
codegen_flags: <defaults>
</compile_context>

<pallas_src>
import jax
import jax.numpy as jnp
from jax import lax
from jax.experimental import pallas as pl
from jax.experimental.pallas import tpu as pltpu


# ----------------------------- Pallas kernels -----------------------------

def gat_proj_kernel(x_ref, w_ref, as_ref, ar_ref, h_ref, f_ref, g_ref):
    """Row-tiled projection: H = X@W, f_i = a_s.h_i, g_i = a_r.h_i."""
    h = jnp.dot(x_ref[...].astype(jnp.bfloat16), w_ref[...].astype(jnp.bfloat16),
                preferred_element_type=jnp.float32)                 # (TM, Fout)
    h_ref[...] = h.astype(h_ref.dtype)                              # bf16 out
    # rank-1 "matmuls" done as VPU multiply + lane reduce (frees the MXU)
    f_ref[...] = jnp.sum(h * as_ref[...], axis=-1, keepdims=True)   # (TM, 1)
    g_ref[...] = jnp.sum(h * ar_ref[...], axis=-1, keepdims=True)   # (TM, 1)


def gat_attn_kernel(adj_ref, f_ref, g_ref, h_ref, o_ref, c_ref):
    """Row-tiled attention: e=sigmoid(f_i+g_j), masked softmax, out = C@H."""
    adj = adj_ref[...]                                   # (TM, N) int8 mask
    e = jax.nn.sigmoid(f_ref[...] + g_ref[...])          # (TM, N), bounded (0,1)
    # sigmoid output is bounded, so no max-subtract needed before exp.
    p = jnp.where(adj > 0, jnp.exp(e), 0.0)
    denom = jnp.sum(p, axis=-1, keepdims=True)
    denom = jnp.where(denom > 0.0, denom, 1.0)           # isolated-node guard
    # Exact normalization: approx reciprocal broke the row-sum==1 invariant.
    c = p / denom
    c_ref[...] = c
    o_ref[...] = jnp.dot(c.astype(jnp.bfloat16), h_ref[...],
                         preferred_element_type=jnp.float32)


def ahat_kernel(zrow_ref, zfull_ref, gamma_ref, beta_ref, out_ref):
    """Row-tiled A_hat = sigmoid(LayerNorm_nodes(Z @ Z^T))."""
    zr = zrow_ref[...]                                    # (TM, D) bf16
    zf = zfull_ref[...]                                   # (N, D)  bf16
    s = lax.dot_general(zr, zf, (((1,), (1,)), ((), ())),
                        preferred_element_type=jnp.float32)          # (TM, N)
    mu = jnp.mean(s, axis=-1, keepdims=True)
    var = jnp.mean((s - mu) * (s - mu), axis=-1, keepdims=True)
    sn = (s - mu) * lax.rsqrt(var + 1e-5)
    sn = sn * gamma_ref[...] + beta_ref[...]              # affine (gamma=1, beta=0)
    out_ref[...] = jax.nn.sigmoid(sn)


def cdl_kernel(x_ref, a_ref, w_ref, b_ref, p_ref, xp_ref, ap_ref):
    """Community-detection layer: soft assignment + graph pooling."""
    # TODO(synk): for very large N, stream the N contraction (grid reduction
    # axis + VMEM accumulators) instead of holding full (N,N) A in VMEM.
    x = x_ref[...]                                        # (N, F)
    a = a_ref[...]                                        # (N, N)
    logits = jnp.dot(x.astype(jnp.bfloat16), w_ref[...].astype(jnp.bfloat16),
                     preferred_element_type=jnp.float32) + b_ref[...]
    logits = logits - jnp.max(logits, axis=-1, keepdims=True)
    e = jnp.exp(logits)
    p = e / jnp.sum(e, axis=-1, keepdims=True)            # (N, C) soft assignments

    pb = p.astype(jnp.bfloat16)
    xp = lax.dot_general(pb, x.astype(jnp.bfloat16), (((0,), (0,)), ((), ())),
                         preferred_element_type=jnp.float32)          # (C, F)
    pta = lax.dot_general(pb, a.astype(jnp.bfloat16), (((0,), (0,)), ((), ())),
                          preferred_element_type=jnp.float32)         # (C, N)
    ap = jnp.dot(pta.astype(jnp.bfloat16), pb,
                 preferred_element_type=jnp.float32)                  # (C, C)

    p_ref[...] = p
    xp_ref[...] = xp
    ap_ref[...] = ap


# ----------------------------- pallas_call wrappers -----------------------------

def _row_tile(n, target=256):
    """Largest clean row-tile <= target that divides n (whole array if tiny)."""
    if n <= target:
        return n
    for t in (target, 128, 64, 32, 16, 8):
        if n % t == 0:
            return t
    return n


_PARALLEL = pltpu.CompilerParams(dimension_semantics=("parallel",))


def gat_layer(x, a_mask, w, a_s, a_r):
    """One graph-attention layer (attention_act='Sigmoid', norm=False)."""
    n, f_in = x.shape
    f_out = w.shape[1]
    tm = _row_tile(n)
    grid = (n // tm,)

    # ---- projection pass (row-tiled) ----
    h, f, g = pl.pallas_call(
        gat_proj_kernel,
        grid=grid,
        in_specs=[pl.BlockSpec((tm, f_in), lambda i: (i, 0)),
                  pl.BlockSpec((f_in, f_out), lambda i: (0, 0)),
                  pl.BlockSpec((1, f_out), lambda i: (0, 0)),
                  pl.BlockSpec((1, f_out), lambda i: (0, 0))],
        out_specs=(pl.BlockSpec((tm, f_out), lambda i: (i, 0)),
                   pl.BlockSpec((tm, 1), lambda i: (i, 0)),
                   pl.BlockSpec((tm, 1), lambda i: (i, 0))),
        out_shape=(jax.ShapeDtypeStruct((n, f_out), jnp.bfloat16),
                   jax.ShapeDtypeStruct((n, 1), jnp.float32),
                   jax.ShapeDtypeStruct((n, 1), jnp.float32)),
        compiler_params=_PARALLEL,
    )(x, w, a_s, a_r)

    g_row = g.reshape(1, n)   # cheap wrapper-side transpose (avoids in-kernel XLU)

    cost = pl.CostEstimate(
        flops=int(2 * n * n * f_out),
        transcendentals=int(2 * n * n),
        bytes_accessed=int(n * n * (1 + 4 + 4) + 2 * n * f_out * 4))

    # ---- attention pass (row-tiled, N^2 traffic is the hot path) ----
    h_out, c = pl.pallas_call(
        gat_attn_kernel,
        grid=grid,
        in_specs=[pl.BlockSpec((tm, n), lambda i: (i, 0)),      # adj mask (int8)
                  pl.BlockSpec((tm, 1), lambda i: (i, 0)),      # f row block
                  pl.BlockSpec((1, n), lambda i: (0, 0)),       # g row (resident)
                  pl.BlockSpec((n, f_out), lambda i: (0, 0))],  # H bf16 (resident)
        out_specs=(pl.BlockSpec((tm, f_out), lambda i: (i, 0)),
                   pl.BlockSpec((tm, n), lambda i: (i, 0))),
        out_shape=(jax.ShapeDtypeStruct((n, f_out), jnp.float32),
                   jax.ShapeDtypeStruct((n, n), jnp.float32)),
        compiler_params=_PARALLEL,
        cost_estimate=cost,
    )(a_mask, f, g_row, h)
    return h_out, c


def a_hat_layer(z, gamma, beta):
    n, d = z.shape
    tm = _row_tile(n)
    grid = (n // tm,)
    zb = z.astype(jnp.bfloat16)   # half the resident full-Z bytes, MXU-native
    cost = pl.CostEstimate(
        flops=int(2 * n * n * d),
        transcendentals=int(n * n),
        bytes_accessed=int(n * n * 4 + n * d * 2))
    return pl.pallas_call(
        ahat_kernel,
        grid=grid,
        in_specs=[pl.BlockSpec((tm, d), lambda i: (i, 0)),   # Z row block
                  pl.BlockSpec((n, d), lambda i: (0, 0)),    # Z full (resident)
                  pl.BlockSpec((1, n), lambda i: (0, 0)),
                  pl.BlockSpec((1, n), lambda i: (0, 0))],
        out_specs=pl.BlockSpec((tm, n), lambda i: (i, 0)),
        out_shape=jax.ShapeDtypeStruct((n, n), jnp.float32),
        compiler_params=_PARALLEL,
        cost_estimate=cost,
    )(zb, zb, gamma, beta)


def cdl_layer(x, a, w, b):
    n, f = x.shape
    c = w.shape[1]
    vmem = pl.BlockSpec(memory_space=pltpu.MemorySpace.VMEM)
    return pl.pallas_call(
        cdl_kernel,
        out_shape=(jax.ShapeDtypeStruct((n, c), jnp.float32),
                   jax.ShapeDtypeStruct((c, f), jnp.float32),
                   jax.ShapeDtypeStruct((c, c), jnp.float32)),
        in_specs=[vmem, vmem, vmem, vmem],
        out_specs=(vmem, vmem, vmem),
    )(x, a, w, b)


# ----------------------------- HCD forward (glue) -----------------------------

def init_params(key, nodes, attrib, hidden_dims, comm_sizes):
    keys = iter(jax.random.split(key, 64))

    def nrm(shape):
        return (0.1 * jax.random.normal(next(keys), shape)).astype(jnp.float32)

    params = {}
    # encoder GATE: attrib -> hidden_dims
    enc_dims = [attrib] + list(hidden_dims)
    params['encoder'] = [(nrm((enc_dims[i], enc_dims[i + 1])),   # W
                          nrm((1, enc_dims[i + 1])),             # a_s (row vector)
                          nrm((1, enc_dims[i + 1])))             # a_r (row vector)
                         for i in range(len(hidden_dims))]
    # decoder GATE: hidden_dims[-1] -> reversed(hidden_dims)[1:] + [attrib]
    dec_hid = list(reversed(hidden_dims))[1:] + [attrib]
    dec_dims = [hidden_dims[-1]] + dec_hid
    params['decoder'] = [(nrm((dec_dims[i], dec_dims[i + 1])),
                          nrm((1, dec_dims[i + 1])),
                          nrm((1, dec_dims[i + 1])))
                         for i in range(len(dec_hid))]
    # community module: each CDL maps previous features -> comm assignments
    params['comm'] = [(nrm((hidden_dims[-1], c)), nrm((1, c))) for c in comm_sizes]
    # dpd_norm = nn.LayerNorm(nodes): weight ones, bias zeros (default init)
    params['dpd_gamma'] = jnp.ones((1, nodes), jnp.float32)
    params['dpd_beta'] = jnp.zeros((1, nodes), jnp.float32)
    return params


def hcd_forward(X, A, params):
    # act_norm = Identity (normalize_inputs=False)
    H = X

    # adjacency is only compared to 0 inside the GAT layers -> int8 mask (4x HBM)
    A_mask = (A > 0).astype(jnp.int8)

    # ---- encoder ----
    enc_attn = []
    h = H
    for (w, a_s, a_r) in params['encoder']:
        h, c = gat_layer(h, A_mask, w, a_s, a_r)
        enc_attn.append(c)
    Z = h

    # ---- A_hat = sigmoid(LayerNorm(Z Z^T)) ----
    A_hat = a_hat_layer(Z, params['dpd_gamma'], params['dpd_beta'])

    # ---- decoder ----
    dec_attn = []
    h = Z
    for (w, a_s, a_r) in params['decoder']:
        h, c = gat_layer(h, A_mask, w, a_s, a_r)
        dec_attn.append(c)
    X_hat = h

    # ---- community detection module ----
    X_all, A_all, P_all, S = [], [], [], []
    x_cur, a_cur = Z, A
    for (w, b) in params['comm']:
        p, xp, ap = cdl_layer(x_cur, a_cur, w, b)
        s = jnp.argmax(p, axis=-1)               # hard community labels (glue)
        X_all.append(xp)
        A_all.append(ap)
        P_all.append(p)
        S.append(s)
        x_cur, a_cur = xp, ap

    A_all_final = [A] + A_all
    X_all_final = [Z] + X_all
    return (X_hat, A_hat, X_all_final, A_all_final, P_all, S,
            [enc_attn, dec_attn])


# ----------------------------- demo -----------------------------

if __name__ == "__main__":
    NODES = 16
    ATTRIB = 32
    HIDDEN = [16, 8]
    COMMS = [4, 2]

    key = jax.random.PRNGKey(0)
    k_x, k_a, k_p = jax.random.split(key, 3)

    X = jax.random.normal(k_x, (NODES, ATTRIB), dtype=jnp.float32)
    A = (jax.random.uniform(k_a, (NODES, NODES)) < 0.3).astype(jnp.float32)
    A = jnp.maximum(A, A.T)
    A = jnp.maximum(A, jnp.eye(NODES, dtype=jnp.float32))   # self loops

    params = init_params(k_p, NODES, ATTRIB, HIDDEN, COMMS)

    out = hcd_forward(X, A, params)
    out = jax.block_until_ready(out)

    X_hat, A_hat, X_all, A_all, P_all, S, attn = out
    assert X_hat.shape == (NODES, ATTRIB)
    assert A_hat.shape == (NODES, NODES)
    assert X_all[0].shape == (NODES, HIDDEN[-1])
    assert X_all[1].shape == (COMMS[0], HIDDEN[-1])
    assert A_all[2].shape == (COMMS[1], COMMS[1])
    assert attn[0][0].shape == (NODES, NODES)
    assert all(bool(jnp.all(jnp.isfinite(t))) for t in [X_hat, A_hat] + X_all + A_all + P_all)
    # attention rows over real neighbours sum to 1 (exact normalization now)
    assert bool(jnp.allclose(jnp.sum(attn[0][0], axis=-1), 1.0, atol=1e-3))
    assert bool(jnp.allclose(jnp.sum(attn[1][0], axis=-1), 1.0, atol=1e-3))
    # soft community assignments are row-stochastic
    assert bool(jnp.allclose(jnp.sum(P_all[0], axis=-1), 1.0, atol=1e-3))

    print("KERNEL_OK")
</pallas_src>

<mosaic_0001>
module attributes {stable_mosaic.version = 11 : i64} {
  func.func @gat_proj_kernel(%arg0: i32, %arg1: memref<16x32xf32, #tpu.memory_space<vmem>>, %arg2: memref<32x16xf32, #tpu.memory_space<vmem>>, %arg3: memref<1x16xf32, #tpu.memory_space<vmem>>, %arg4: memref<1x16xf32, #tpu.memory_space<vmem>>, %arg5: memref<16x16xbf16, #tpu.memory_space<vmem>>, %arg6: memref<16x1xf32, #tpu.memory_space<vmem>>, %arg7: memref<16x1xf32, #tpu.memory_space<vmem>>) attributes {dimension_semantics = [#tpu.dimension_semantics<parallel>], iteration_bounds = array<i64: 1>, scalar_prefetch = 0 : i64, scratch_operands = 0 : i64, tpu.core_type = #tpu.core_type<tc>, window_params = [{transform_indices = @transform_0, window_bounds = array<i64: 16, 32>}, {pipeline_mode = #tpu.pipeline_mode<synchronous>, transform_indices = @transform_1, window_bounds = array<i64: 32, 16>}, {pipeline_mode = #tpu.pipeline_mode<synchronous>, transform_indices = @transform_2, window_bounds = array<i64: 1, 16>}, {pipeline_mode = #tpu.pipeline_mode<synchronous>, transform_indices = @transform_3, window_bounds = array<i64: 1, 16>}, {transform_indices = @transform_4, window_bounds = array<i64: 16, 16>}, {transform_indices = @transform_5, window_bounds = array<i64: 16, 1>}, {transform_indices = @transform_6, window_bounds = array<i64: 16, 1>}]} {
    %c0 = arith.constant 0 : index
    %c0_0 = arith.constant 0 : index
    %0 = vector.load %arg1[%c0, %c0_0] : memref<16x32xf32, #tpu.memory_space<vmem>>, vector<16x32xf32>
    %1 = arith.truncf %0 : vector<16x32xf32> to vector<16x32xbf16>
    %c0_1 = arith.constant 0 : index
    %c0_2 = arith.constant 0 : index
    %2 = vector.load %arg2[%c0_1, %c0_2] : memref<32x16xf32, #tpu.memory_space<vmem>>, vector<32x16xf32>
    %3 = arith.truncf %2 : vector<32x16xf32> to vector<32x16xbf16>
    %cst = arith.constant dense<0.000000e+00> : vector<16x16xf32>
    %4 = tpu.matmul %1, %3, %cst {dimension_numbers = #tpu.dot_dimension_numbers<[1], [0], [0], [1], [0, 0, 1, 1], [], []>} : vector<16x32xbf16>, vector<32x16xbf16>, vector<16x16xf32> -> vector<16x16xf32>
    %5 = arith.truncf %4 : vector<16x16xf32> to vector<16x16xbf16>
    %c0_3 = arith.constant 0 : index
    %c0_4 = arith.constant 0 : index
    %6 = vector.load %arg5[%c0_3, %c0_4] : memref<16x16xbf16, #tpu.memory_space<vmem>>, vector<16x16xbf16>
    tpu.vector_store %arg5[%c0_3, %c0_4], %5 {strides = array<i32>} : memref<16x16xbf16, #tpu.memory_space<vmem>>, vector<16x16xbf16>,
    %c0_5 = arith.constant 0 : index
    %c0_6 = arith.constant 0 : index
    %7 = vector.load %arg3[%c0_5, %c0_6] : memref<1x16xf32, #tpu.memory_space<vmem>>, vector<1x16xf32>
    %8 = vector.broadcast %7 : vector<1x16xf32> to vector<16x16xf32>
    %9 = arith.mulf %4, %8 : vector<16x16xf32>
    %cst_7 = arith.constant dense<0.000000e+00> : vector<16xf32>
    %10 = vector.multi_reduction <add>, %9, %cst_7 [1] : vector<16x16xf32> to vector<16xf32>
    %11 = vector.shape_cast %10 : vector<16xf32> to vector<16x1xf32>
    %c0_8 = arith.constant 0 : index
    %c0_9 = arith.constant 0 : index
    %12 = vector.load %arg6[%c0_8, %c0_9] : memref<16x1xf32, #tpu.memory_space<vmem>>, vector<16x1xf32>
    tpu.vector_store %arg6[%c0_8, %c0_9], %11 {strides = array<i32>} : memref<16x1xf32, #tpu.memory_space<vmem>>, vector<16x1xf32>,
    %c0_10 = arith.constant 0 : index
    %c0_11 = arith.constant 0 : index
    %13 = vector.load %arg4[%c0_10, %c0_11] : memref<1x16xf32, #tpu.memory_space<vmem>>, vector<1x16xf32>
    %14 = vector.broadcast %13 : vector<1x16xf32> to vector<16x16xf32>
    %15 = arith.mulf %4, %14 : vector<16x16xf32>
    %cst_12 = arith.constant dense<0.000000e+00> : vector<16xf32>
    %16 = vector.multi_reduction <add>, %15, %cst_12 [1] : vector<16x16xf32> to vector<16xf32>
    %17 = vector.shape_cast %16 : vector<16xf32> to vector<16x1xf32>
    %c0_13 = arith.constant 0 : index
    %c0_14 = arith.constant 0 : index
    %18 = vector.load %arg7[%c0_13, %c0_14] : memref<16x1xf32, #tpu.memory_space<vmem>>, vector<16x1xf32>
    tpu.vector_store %arg7[%c0_13, %c0_14], %17 {strides = array<i32>} : memref<16x1xf32, #tpu.memory_space<vmem>>, vector<16x1xf32>,
    return
  }
  func.func @transform_0(%arg0: i32) -> (i32, i32) {
    %c0_i32 = arith.constant 0 : i32
    %c0_i32_0 = arith.constant 0 : i32
    return %arg0, %c0_i32 : i32, i32
  }
  func.func @transform_1(%arg0: i32) -> (i32, i32) {
    %c0_i32 = arith.constant 0 : i32
    %c0_i32_0 = arith.constant 0 : i32
    %c0_i32_1 = arith.constant 0 : i32
    return %c0_i32, %c0_i32_0 : i32, i32
  }
  func.func @transform_2(%arg0: i32) -> (i32, i32) {
    %c0_i32 = arith.constant 0 : i32
    %c0_i32_0 = arith.constant 0 : i32
    %c0_i32_1 = arith.constant 0 : i32
    return %c0_i32, %c0_i32_0 : i32, i32
  }
  func.func @transform_3(%arg0: i32) -> (i32, i32) {
    %c0_i32 = arith.constant 0 : i32
    %c0_i32_0 = arith.constant 0 : i32
    %c0_i32_1 = arith.constant 0 : i32
    return %c0_i32, %c0_i32_0 : i32, i32
  }
  func.func @transform_4(%arg0: i32) -> (i32, i32) {
    %c0_i32 = arith.constant 0 : i32
    %c0_i32_0 = arith.constant 0 : i32
    return %arg0, %c0_i32 : i32, i32
  }
  func.func @transform_5(%arg0: i32) -> (i32, i32) {
    %c0_i32 = arith.constant 0 : i32
    %c0_i32_0 = arith.constant 0 : i32
    return %arg0, %c0_i32 : i32, i32
  }
  func.func @transform_6(%arg0: i32) -> (i32, i32) {
    %c0_i32 = arith.constant 0 : i32
    %c0_i32_0 = arith.constant 0 : i32
    return %arg0, %c0_i32 : i32, i32
  }
}

</mosaic_0001>

<llo_original>
// kernel: tpu_custom_call.1
$region0: #{tpu_custom_call.1}
  #allocation0 [shape = 'u32[]', space=smem, size = 0x4, offset = 0x4, fixed_abs, tag = 'smem constant byte address 0x4 - core index']
  #allocation1 [shape = 'u32[144,128]{1,0:T(1,128)}', space=vmem, size = 0x12000, scoped, tag = 'internal scratch']
  %s0 = inlined_call_operand.vmem [shape: f32[16,32], index: 0, kind: input, shape index: {}]
  %s1 = inlined_call_operand.vmem [shape: f32[32,16], index: 1, kind: input, shape index: {}]
  %s2 = inlined_call_operand.vmem [shape: f32[1,16], index: 2, kind: input, shape index: {}]
  %s3 = inlined_call_operand.vmem [shape: f32[1,16], index: 3, kind: input, shape index: {}]
  %s4 = inlined_call_operand.hbm [shape: bf16[16,16], index: 4, kind: output, shape index: {0}]
  %s5 = inlined_call_operand.vmem [shape: f32[16,1], index: 5, kind: output, shape index: {1}]
  %s6 = inlined_call_operand.vmem [shape: f32[16,1], index: 6, kind: output, shape index: {2}]
  %7 = xla_tuple %s4, %s5, %s6
  %s8 = sld [smem:[#allocation0]]
  $region42: #{tpu_custom_call.1} parent=0
    _
  %s10 = ssub.s32 1, %s8
  %s11 = scalar_select 0, %s10, %s8
  $region1: #{tpu_custom_call.1} parent=0
    #allocation2 [shape = 'u8[4096]{0}', space=vmem, size = 0x1000, scoped, tag = 'output window, operand 0, single buffered']
    #allocation3 [shape = 's32[1]{0}', space=sflag, size = 0x4, scoped, tag = 'scoped memory for tpu_custom_call.1']
    %12 = vsyncpa [#allocation3], 0
    // Predicated region
    $region2: #{tpu_custom_call.1} parent=1 // pred_check
      _
    $region3: #{tpu_custom_call.1} parent=1 // pred_check_branch
      %14 = sbr.rel (0) target = $region5
    $region4: #{tpu_custom_call.1} parent=1 // pred_region
      _
    $region5: #{tpu_custom_call.1} parent=1 // pred_fallthru
      _
    // Predicated region
    $region6: #{tpu_custom_call.1} parent=1 // pred_check
      _
    $region7: #{tpu_custom_call.1} parent=1 // pred_check_branch
      %16 = sbr.rel (0) target = $region9
    $region8: #{tpu_custom_call.1} parent=1 // pred_region
      _
    $region9: #{tpu_custom_call.1} parent=1 // pred_fallthru
      _
    // Predicated region
    $region10: #{tpu_custom_call.1} parent=1 // pred_check
      _
    $region11: #{tpu_custom_call.1} parent=1 // pred_check_branch
      %18 = sbr.rel (0) target = $region13
    $region12: #{tpu_custom_call.1} parent=1 // pred_region
      _
    $region13: #{tpu_custom_call.1} parent=1 // pred_fallthru
      _
    // Predicated region
    $region14: #{tpu_custom_call.1} parent=1 // pred_check
      _
    $region15: #{tpu_custom_call.1} parent=1 // pred_check_branch
      %20 = sbr.rel (0) target = $region17
    $region16: #{tpu_custom_call.1} parent=1 // pred_region
      _
    $region17: #{tpu_custom_call.1} parent=1 // pred_fallthru
      _
    %v22 = vld [vmem:[%s0] sm:$0xff]
    %v23 = vld [vmem:[%s0 + $0x8] sm:$0xff]
    %v24 = vpack.c.bf16 %v23, %v22
    %v25 = vld [vmem:[%s1] sm:$0xff]
    %v26 = vld [vmem:[%s1 + $0x8] sm:$0xff]
    %v27 = vld [vmem:[%s1 + $0x10] sm:$0xff]
    %v28 = vld [vmem:[%s1 + $0x18] sm:$0xff]
    %v29 = vpack.c.bf16 %v26, %v25
    %v30 = vpack.c.bf16 %v28, %v27
    %vm31 = vcmask 261120
    %v33 = vsel %vm31, %v24, 0
    %35 = vmatprep.subr.bf16.mxu0 0
    %36 = vmatpush1.bf16.msra.mxu0 %v29
    %37 = vmatprep.subr.bf16.mxu0 0
    %38 = vmatpush1.bf16.msra.mxu0 %v30
    %39 = vmatprep.subr.bf16.mxu0 0
    %40 = vmatpush1.bf16.msra.mxu0 0
    %41 = vmatprep.subr.bf16.mxu0 0
    %42 = vmatpush1.bf16.msra.mxu0 0
    %43 = vmatprep.subr.bf16.mxu0 0
    %44 = vmatpush1.bf16.msra.mxu0 0
    %45 = vmatprep.subr.bf16.mxu0 0
    %46 = vmatpush1.bf16.msra.mxu0 0
    %47 = vmatprep.subr.bf16.mxu0 0
    %48 = vmatpush1.bf16.msra.mxu0 0
    %49 = vmatprep.subr.bf16.mxu0 0
    %50 = vmatpush1.bf16.msra.mxu0 0
    %51 = vmatprep.subr.bf16.mxu0 0
    %52 = vmatpush1.bf16.msra.mxu0 0
    %53 = vmatprep.subr.bf16.mxu0 0
    %54 = vmatpush1.bf16.msra.mxu0 0
    %55 = vmatprep.subr.bf16.mxu0 0
    %56 = vmatpush1.bf16.msra.mxu0 0
    %57 = vmatprep.subr.bf16.mxu0 0
    %58 = vmatpush1.bf16.msra.mxu0 0
    %59 = vmatprep.subr.bf16.mxu0 0
    %60 = vmatpush1.bf16.msra.mxu0 0
    %61 = vmatprep.subr.bf16.mxu0 0
    %62 = vmatpush1.bf16.msra.mxu0 0
    %63 = vmatprep.subr.bf16.mxu0 0
    %64 = vmatpush1.bf16.msra.mxu0 0
    %65 = vmatprep.subr.bf16.mxu0 0
    %66 = vmatpush1.bf16.msra.mxu0 0
    %67 = vmatprep.mubr.bf16.mxu0 0
    %68 = vmatmul.mubr.bf16.gmra.mrb[0].mxu0 %v33
    %v69 = vpop.f32.mrb[0].mxu0
    %v70 = vadd.f32 0.0, %v69
    %v71 = vpop.f32.mrb[0].mxu0
    %v72 = vpop.f32.mrb[0].mxu0
    %v73 = vadd.f32 0.0, %v72
    %v74 = vpop.f32.mrb[0].mxu0
    %75 = vdwg.mxu0
    %v76 = vpack.c.bf16 %v73, %v70
    %v78 = vunpack.c.l.b16 %v76
    %v79 = vunpack.c.h.b16 %v76
    %v80 = vpack.c.b16 %v78, %v78
    %v81 = vpack.c.b16 %v79, %v79
    %vm84 = vcmask 125952
    %85 = vst.msk [vmem:[#allocation2] sm:$0xf] %vm84, %v80
    %86 = vst.msk [vmem:[#allocation2 + $0x4] sm:$0xf] %vm84, %v81
    %v87 = vld [vmem:[%s2] sm:$0x1]
    %v89 = vlaneseq
    %v90 = vshrl.u32 %v89, 7
    %v91 = vsub.s32 0, %v90
    %v92 = vrot.slane %v87, %v91
    %v94 = vmul.f32 %v70, %v92
    %v95 = vmul.f32 %v73, %v92
    %vm96 = vcmask 130048
    %v97 = vsel %vm96, %v94, 0.0
    %98 = vadd.xlane.f32.xlu0 %v97
    %v99 = vpop.xlane.xlu0 %98
    %v100 = vsel %vm96, %v95, 0.0
    %101 = vadd.xlane.f32.xlu0 %v100
    %v102 = vpop.xlane.xlu0 %101
    %vm103 = vcmask 7168
    %104 = vst.msk [vmem:[%s5] sm:$0xff] %vm103, %v99
    %105 = vst.msk [vmem:[%s5 + $0x8] sm:$0xff] %vm103, %v102
    %v106 = vld [vmem:[%s3] sm:$0x1]
    %v108 = vlaneseq
    %v109 = vshrl.u32 %v108, 7
    %v110 = vsub.s32 0, %v109
    %v111 = vrot.slane %v106, %v110
    %v113 = vmul.f32 %v70, %v111
    %v114 = vmul.f32 %v73, %v111
    %v115 = vsel %vm96, %v113, 0.0
    %116 = vadd.xlane.f32.xlu0 %v115
    %v117 = vpop.xlane.xlu0 %116
    %v118 = vsel %vm96, %v114, 0.0
    %119 = vadd.xlane.f32.xlu0 %v118
    %v120 = vpop.xlane.xlu0 %119
    %121 = vst.msk [vmem:[%s6] sm:$0xff] %vm103, %v117
    %122 = vst.msk [vmem:[%s6 + $0x8] sm:$0xff] %vm103, %v120
    // Predicated region
    $region18: #{tpu_custom_call.1} parent=1 // pred_check
      _
    $region19: #{tpu_custom_call.1} parent=1 // pred_check_branch
      %124 = sbr.rel (0) target = $region21
    $region20: #{tpu_custom_call.1} parent=1 // pred_region
      %s126 = ssub.s32 128, 128
      %127 = vsyncadd [#allocation3], %s126
      %s128 = sshll.u32 [#allocation2], 4
      %s129 = int_to_ptr.vmem [resolvable:$true] %s128
      %134 = dma.vmem_to_hbm [thread:$0]  %s129, 128, %s4, [#allocation3], 64, 64, 4
    $region21: #{tpu_custom_call.1} parent=1 // pred_fallthru
      _
    // Predicated region
    $region22: #{tpu_custom_call.1} parent=1 // pred_check
      _
    $region23: #{tpu_custom_call.1} parent=1 // pred_check_branch
      %136 = sbr.rel (0) target = $region25
    $region24: #{tpu_custom_call.1} parent=1 // pred_region
      _
    $region25: #{tpu_custom_call.1} parent=1 // pred_fallthru
      _
    // Predicated region
    $region26: #{tpu_custom_call.1} parent=1 // pred_check
      _
    $region27: #{tpu_custom_call.1} parent=1 // pred_check_branch
      %138 = sbr.rel (0) target = $region29
    $region28: #{tpu_custom_call.1} parent=1 // pred_region
      _
    $region29: #{tpu_custom_call.1} parent=1 // pred_fallthru
      _
    // Predicated region
    $region30: #{tpu_custom_call.1} parent=1 // pred_check
      _
    $region31: #{tpu_custom_call.1} parent=1 // pred_check_branch
      %140 = sbr.rel (0) target = $region33
    $region32: #{tpu_custom_call.1} parent=1 // pred_region
      %141 = dma.done [#allocation3], 128
    $region33: #{tpu_custom_call.1} parent=1 // pred_fallthru
      _
    // Predicated region
    $region34: #{tpu_custom_call.1} parent=1 // pred_check
      _
    $region35: #{tpu_custom_call.1} parent=1 // pred_check_branch
      %143 = sbr.rel (0) target = $region37
    $region36: #{tpu_custom_call.1} parent=1 // pred_region
      _
    $region37: #{tpu_custom_call.1} parent=1 // pred_fallthru
      _
    // Predicated region
    $region38: #{tpu_custom_call.1} parent=1 // pred_check
      _
    $region39: #{tpu_custom_call.1} parent=1 // pred_check_branch
      %145 = sbr.rel (0) target = $region41
    $region40: #{tpu_custom_call.1} parent=1 // pred_region
      _
    $region41: #{tpu_custom_call.1} parent=1 // pred_fallthru
      _
    %146 = vsyncpa [#allocation3], 1

</llo_original>
